<compile_context>
chip_gen: v7x
topology: tpu7x:2x2x1
jax: 0.10.0
libtpu: 0.0.40
codegen_flags: <defaults>
</compile_context>

<pallas_src>
import jax
import jax.numpy as jnp
import numpy as np
from jax import lax
from jax.experimental import pallas as pl
from jax.experimental.pallas import tpu as pltpu

EPS = 1e-5  # nn.BatchNorm2d default eps


# ---------------------------------------------------------------------------
# Kernels
# ---------------------------------------------------------------------------
def _partial_stats(h2d):
    """[rows, C] f32 -> [2, C] (sum, sum of squares)."""
    s = jnp.sum(h2d, axis=0, keepdims=True)
    sq = jnp.sum(h2d * h2d, axis=0, keepdims=True)
    return jnp.concatenate([s, sq], axis=0)


def conv1_kernel(x_ref, w1_ref, h1_ref, st_ref):
    # x_ref: (1, TH, W, Cin) bf16   w1_ref: (Cin, P) bf16
    _, TH, W, Cin = x_ref.shape
    P = w1_ref.shape[1]
    x2d = x_ref[0].reshape(TH * W, Cin)
    h = jnp.dot(x2d, w1_ref[...], preferred_element_type=jnp.float32)
    hb = h.astype(jnp.bfloat16)                      # bf16 HBM intermediate
    h1_ref[...] = hb.reshape(1, TH, W, P)
    # BN stats of the value actually stored (bf16-rounded), upcast to f32.
    st_ref[...] = _partial_stats(hb.astype(jnp.float32)).reshape(1, 1, 2, P)


def conv2_kernel(h1_ref, s1_ref, t1_ref, w2_ref, h2_ref, st_ref, apad_ref):
    # h1_ref: (1, H, W, P) bf16 -- full image, stays VMEM-resident across t
    # s1/t1 : (1, P) f32 (folded BN1 scale/shift)
    # w2_ref: (3, 3, P, P) bf16
    # h2_ref: (1, TH, W, P) bf16     st_ref: (1, 1, 2, P) f32
    # apad_ref: VMEM scratch (TH+2, W+2, P) bf16 (zero-padded bn1+relu tile)
    _, H, W, P = h1_ref.shape
    TH = h2_ref.shape[1]
    t = pl.program_id(1)
    T = pl.num_programs(1)
    r0 = pl.multiple_of(t * TH, TH)

    def bn1_relu(v):  # bf16 in, bf16 out (compute in f32)
        return jnp.maximum(v.astype(jnp.float32) * s1_ref[...] + t1_ref[...],
                           0.0).astype(jnp.bfloat16)

    # Zero only the 1-pixel left/right border columns each step (the interior
    # and the top/bottom halo rows are fully rewritten below), instead of the
    # whole scratch: vst is the scarcest VLIW slot and pass 2 is store-heavy.
    zcol = jnp.zeros((TH + 2, 1, P), jnp.bfloat16)
    apad_ref[:, 0:1, :] = zcol
    apad_ref[:, W + 1:W + 2, :] = zcol

    # Interior rows of this tile.
    center = h1_ref[0, pl.ds(r0, TH)]                         # (TH, W, P)
    apad_ref[1:TH + 1, 1:W + 1, :] = bn1_relu(center)

    # Halo rows from the resident full-image h1 block (zero at image borders).
    top = bn1_relu(h1_ref[0, pl.ds(jnp.maximum(r0 - 1, 0), 1)])      # (1, W, P)
    apad_ref[0:1, 1:W + 1, :] = jnp.where(t > 0, top, jnp.zeros_like(top))
    bot = bn1_relu(h1_ref[0, pl.ds(jnp.minimum(r0 + TH, H - 1), 1)])  # (1, W, P)
    apad_ref[TH + 1:TH + 2, 1:W + 1, :] = jnp.where(t < T - 1, bot,
                                                    jnp.zeros_like(bot))

    # 3x3 conv as 9 shifted [TH*W, P] x [P, P] MXU matmuls, f32 accumulation.
    # The accumulator is bounded to TH*W*P*4 bytes by the row tiling.
    # TODO(synk): fold the 3 dx taps into one K=3P matmul (deeper MXU fill on
    #             v6e/v7x 256-deep MXUs) once the lane-concat relayout cost is
    #             verified for P < 128 stages.
    acc = jnp.zeros((TH * W, P), jnp.float32)
    for dy in range(3):
        for dx in range(3):
            win = apad_ref[dy:dy + TH, dx:dx + W, :]           # (TH, W, P) bf16
            acc = acc + jnp.dot(win.reshape(TH * W, P), w2_ref[dy, dx],
                                preferred_element_type=jnp.float32)

    hb = acc.astype(jnp.bfloat16)                              # bf16 HBM store
    h2_ref[...] = hb.reshape(1, TH, W, P)
    st_ref[...] = _partial_stats(hb.astype(jnp.float32)).reshape(1, 1, 2, P)


def conv3_stats_kernel(h2_ref, s2_ref, t2_ref, w3_ref, st_ref):
    # h2_ref: (1, TH, W, P) bf16   w3_ref: (P, 4P) bf16
    _, TH, W, P = h2_ref.shape
    C4 = w3_ref.shape[1]
    a = jnp.maximum(h2_ref[0].astype(jnp.float32) * s2_ref[...] + t2_ref[...],
                    0.0)
    a2d = a.reshape(TH * W, P).astype(jnp.bfloat16)
    h3 = jnp.dot(a2d, w3_ref[...], preferred_element_type=jnp.float32)
    st_ref[...] = _partial_stats(h3).reshape(1, 1, 2, C4)


def conv3_apply_kernel(h2_ref, s2_ref, t2_ref, w3_ref, s3_ref, t3_ref,
                       x_ref, o_ref):
    # Recompute conv3 (cheap: K = P) instead of storing the 4P-wide h3 in HBM.
    _, TH, W, P = h2_ref.shape
    C4 = w3_ref.shape[1]
    a = jnp.maximum(h2_ref[0].astype(jnp.float32) * s2_ref[...] + t2_ref[...],
                    0.0)
    a2d = a.reshape(TH * W, P).astype(jnp.bfloat16)
    h3 = jnp.dot(a2d, w3_ref[...], preferred_element_type=jnp.float32)
    res = x_ref[0].reshape(TH * W, C4).astype(jnp.float32)     # bf16 residual
    out = jnp.maximum(h3 * s3_ref[...] + t3_ref[...] + res, 0.0)
    o_ref[...] = out.reshape(1, TH, W, C4).astype(o_ref.dtype)


# ---------------------------------------------------------------------------
# Wrapper
# ---------------------------------------------------------------------------
def _vmem_limit_bytes(default_cap=64 << 20):
    """~48 MiB on v7x (64 MiB VMEM), ~112 MiB on v5e/v6e (128 MiB VMEM)."""
    cap = default_cap
    try:
        info = pltpu.get_tpu_info()
        cap = int(getattr(info, "vmem_capacity_bytes", default_cap))
    except Exception:
        pass
    return max(32 << 20, cap - (16 << 20))


def _pick_row_tile(H, W, P, acc_budget_bytes=1 << 20):
    """Largest divisor of H whose conv2 f32 accumulator (TH*W*P*4 B) fits the
    budget, preferring >=2 row tiles per image so the BlockSpec pipeline has
    steps to overlap even at small batch sizes."""
    budget_rows = max(1, acc_budget_bytes // max(1, W * P * 4))
    cap = min(budget_rows, max(1, H // 2))
    best = 1
    for th in range(1, H + 1):
        if H % th == 0 and th <= cap:
            best = th
    if best <= 1 and H <= budget_rows:
        best = H   # H prime / tiny: single full-height tile beats 1-row tiles
    return max(1, best)


def bottleneck_forward(x_nchw, params):
    """Pallas implementation of Bottleneck.forward (stride=1, downsample=None,
    dcn=False, so inplanes == planes * 4)."""
    N, Cin, H, W = x_nchw.shape
    P = params["w1"].shape[1]
    C4 = 4 * P
    assert Cin == C4, "no-downsample Bottleneck requires inplanes == planes*4"

    TH = _pick_row_tile(H, W, P)
    T = H // TH
    grid = (N, T)
    rows = N * H * W
    bf16 = jnp.bfloat16

    # Single bf16 NHWC copy of x, used by pass 1 (MXU operand anyway) and as
    # the pass-4 residual: the C4-wide x reads are the largest in the kernel.
    x = jnp.transpose(x_nchw, (0, 2, 3, 1)).astype(bf16)       # (N, H, W, C4)

    # Weights go to the MXU in bf16 (f32 accumulation inside the kernels).
    w1 = params["w1"].astype(bf16)                             # (Cin, P)
    w2 = params["w2_hwio"].astype(bf16)                        # (3, 3, P, P)
    w3 = params["w3"].astype(bf16)                             # (P, 4P)

    cparams = pltpu.CompilerParams(
        dimension_semantics=("parallel", "parallel"),          # megacore shard
        vmem_limit_bytes=_vmem_limit_bytes(),
    )

    tile_spec = lambda c: pl.BlockSpec((1, TH, W, c), lambda n, t: (n, t, 0, 0))
    full_spec = lambda c: pl.BlockSpec((1, H, W, c), lambda n, t: (n, 0, 0, 0))
    vec_spec = lambda c: pl.BlockSpec((1, c), lambda n, t: (0, 0))
    st_spec = lambda c: pl.BlockSpec((1, 1, 2, c), lambda n, t: (n, t, 0, 0))

    n_tot = jnp.float32(rows)

    def scale_shift(st, gamma, beta):
        # st: (N, T, 2, C) per-tile partial sums -> folded BN (scale, shift).
        tot = jnp.sum(st, axis=(0, 1))                         # (2, C)
        mean = tot[0] / n_tot                                  # (C,)
        var = jnp.maximum(tot[1] / n_tot - mean * mean, 0.0)   # biased variance
        scale = (gamma * lax.rsqrt(var + EPS)).astype(jnp.float32)  # (1, C)
        shift = (beta - mean * scale).astype(jnp.float32)            # (1, C)
        return scale, shift

    # --- pass 1: conv1 (1x1) + partial BN1 stats -----------------------------
    h1, st1 = pl.pallas_call(
        conv1_kernel,
        out_shape=(jax.ShapeDtypeStruct((N, H, W, P), bf16),
                   jax.ShapeDtypeStruct((N, T, 2, P), jnp.float32)),
        grid=grid,
        in_specs=[tile_spec(C4),
                  pl.BlockSpec((C4, P), lambda n, t: (0, 0))],
        out_specs=(tile_spec(P), st_spec(P)),
        compiler_params=cparams,
    )(x, w1)
    s1, t1 = scale_shift(st1, params["g1"], params["b1"])

    # --- pass 2: bn1+relu + conv2 (3x3) + partial BN2 stats ------------------
    h2, st2 = pl.pallas_call(
        conv2_kernel,
        out_shape=(jax.ShapeDtypeStruct((N, H, W, P), bf16),
                   jax.ShapeDtypeStruct((N, T, 2, P), jnp.float32)),
        grid=grid,
        in_specs=[full_spec(P), vec_spec(P), vec_spec(P),
                  pl.BlockSpec((3, 3, P, P), lambda n, t: (0, 0, 0, 0))],
        out_specs=(tile_spec(P), st_spec(P)),
        scratch_shapes=[pltpu.VMEM((TH + 2, W + 2, P), bf16)],
        compiler_params=cparams,
    )(h1, s1, t1, w2)
    s2, t2 = scale_shift(st2, params["g2"], params["b2"])

    # --- pass 3: bn2+relu + conv3 (1x1) -> partial BN3 stats -----------------
    st3 = pl.pallas_call(
        conv3_stats_kernel,
        out_shape=jax.ShapeDtypeStruct((N, T, 2, C4), jnp.float32),
        grid=grid,
        in_specs=[tile_spec(P), vec_spec(P), vec_spec(P),
                  pl.BlockSpec((P, C4), lambda n, t: (0, 0))],
        out_specs=st_spec(C4),
        compiler_params=cparams,
    )(h2, s2, t2, w3)
    s3, t3 = scale_shift(st3, params["g3"], params["b3"])

    # --- pass 4: bn2+relu + conv3 + bn3 + residual + relu --------------------
    out = pl.pallas_call(
        conv3_apply_kernel,
        out_shape=jax.ShapeDtypeStruct((N, H, W, C4), jnp.float32),
        grid=grid,
        in_specs=[tile_spec(P), vec_spec(P), vec_spec(P),
                  pl.BlockSpec((P, C4), lambda n, t: (0, 0)),
                  vec_spec(C4), vec_spec(C4),
                  tile_spec(C4)],
        out_specs=tile_spec(C4),
        compiler_params=cparams,
    )(h2, s2, t2, w3, s3, t3, x)

    return jnp.transpose(out, (0, 3, 1, 2))  # back to NCHW


# ---------------------------------------------------------------------------
# Params + pure-JAX reference (matching the kernel's bf16/f32 precision)
# ---------------------------------------------------------------------------
def init_params(key, inplanes, planes):
    c4 = planes * 4
    ks = jax.random.split(key, 9)
    f32 = jnp.float32
    return {
        # conv weights (bias=False in the module)
        "w1": 0.1 * jax.random.normal(ks[0], (inplanes, planes), f32),
        "w2_hwio": 0.1 * jax.random.normal(ks[1], (3, 3, planes, planes), f32),
        "w3": 0.1 * jax.random.normal(ks[2], (planes, c4), f32),
        # batchnorm affine params ([1, C] for row broadcasting)
        "g1": 1.0 + 0.1 * jax.random.normal(ks[3], (1, planes), f32),
        "b1": 0.1 * jax.random.normal(ks[4], (1, planes), f32),
        "g2": 1.0 + 0.1 * jax.random.normal(ks[5], (1, planes), f32),
        "b2": 0.1 * jax.random.normal(ks[6], (1, planes), f32),
        "g3": 1.0 + 0.1 * jax.random.normal(ks[7], (1, c4), f32),
        "b3": 0.1 * jax.random.normal(ks[8], (1, c4), f32),
    }


def reference(x_nchw, p):
    """Pure-JAX reference (training-mode BN) matching the kernel precision:
    bf16 matmul operands + bf16 x feed/residual + bf16 HBM intermediates, with
    f32 accumulation and f32 BN / residual / relu."""
    bf = jnp.bfloat16
    x = jnp.transpose(x_nchw, (0, 2, 3, 1)).astype(bf)     # bf16 feed
    xf = x.astype(jnp.float32)                             # residual

    def bn(h, g, b):
        mean = jnp.mean(h, axis=(0, 1, 2), keepdims=True)
        var = jnp.mean((h - mean) ** 2, axis=(0, 1, 2), keepdims=True)
        return (h - mean) * lax.rsqrt(var + EPS) * g.reshape(1, 1, 1, -1) \
            + b.reshape(1, 1, 1, -1)

    h = jnp.einsum("nhwc,cp->nhwp", x, p["w1"].astype(bf),
                   preferred_element_type=jnp.float32)
    h = h.astype(bf).astype(jnp.float32)                   # bf16 HBM storage
    h = jnp.maximum(bn(h, p["g1"], p["b1"]), 0.0)
    h = lax.conv_general_dilated(
        h.astype(bf), p["w2_hwio"].astype(bf), window_strides=(1, 1),
        padding="SAME", dimension_numbers=("NHWC", "HWIO", "NHWC"),
        preferred_element_type=jnp.float32)
    h = h.astype(bf).astype(jnp.float32)                   # bf16 HBM storage
    h = jnp.maximum(bn(h, p["g2"], p["b2"]), 0.0)
    h = jnp.einsum("nhwp,pq->nhwq", h.astype(bf), p["w3"].astype(bf),
                   preferred_element_type=jnp.float32)
    h = bn(h, p["g3"], p["b3"])
    h = jnp.maximum(h + xf, 0.0)
    return jnp.transpose(h, (0, 3, 1, 2))


if __name__ == "__main__":
    key = jax.random.PRNGKey(0)
    kx, kp = jax.random.split(key)

    N, planes, H, W = 2, 8, 16, 16
    inplanes = planes * 4  # required for the identity residual path

    x = jax.random.normal(kx, (N, inplanes, H, W), jnp.float32)
    params = init_params(kp, inplanes, planes)

    out = bottleneck_forward(x, params)
    out = jax.block_until_ready(out)

    ref = reference(x, params)
    np.testing.assert_allclose(np.asarray(out), np.asarray(ref),
                               rtol=5e-3, atol=5e-3)
    print("KERNEL_OK")
</pallas_src>

<mosaic_0001>
module attributes {stable_mosaic.version = 11 : i64} {
  func.func @conv1_kernel(%arg0: i32, %arg1: i32, %arg2: memref<1x8x16x32xbf16, #tpu.memory_space<vmem>>, %arg3: memref<32x8xbf16, #tpu.memory_space<vmem>>, %arg4: memref<1x8x16x8xbf16, #tpu.memory_space<vmem>>, %arg5: memref<1x1x2x8xf32, #tpu.memory_space<vmem>>) attributes {dimension_semantics = [#tpu.dimension_semantics<parallel>, #tpu.dimension_semantics<parallel>], iteration_bounds = array<i64: 2, 2>, scalar_prefetch = 0 : i64, scratch_operands = 0 : i64, tpu.core_type = #tpu.core_type<tc>, window_params = [{transform_indices = @transform_0, window_bounds = array<i64: 1, 8, 16, 32>}, {pipeline_mode = #tpu.pipeline_mode<synchronous>, transform_indices = @transform_1, window_bounds = array<i64: 32, 8>}, {transform_indices = @transform_2, window_bounds = array<i64: 1, 8, 16, 8>}, {transform_indices = @transform_3, window_bounds = array<i64: 1, 1, 2, 8>}]} {
    %c0 = arith.constant 0 : index
    %c0_0 = arith.constant 0 : index
    %c0_1 = arith.constant 0 : index
    %c0_2 = arith.constant 0 : index
    %0 = vector.load %arg2[%c0, %c0_0, %c0_1, %c0_2] : memref<1x8x16x32xbf16, #tpu.memory_space<vmem>>, vector<1x8x16x32xbf16>
    %1 = vector.shape_cast %0 : vector<1x8x16x32xbf16> to vector<8x16x32xbf16>
    %2 = vector.shape_cast %1 : vector<8x16x32xbf16> to vector<128x32xbf16>
    %c0_3 = arith.constant 0 : index
    %c0_4 = arith.constant 0 : index
    %3 = vector.load %arg3[%c0_3, %c0_4] : memref<32x8xbf16, #tpu.memory_space<vmem>>, vector<32x8xbf16>
    %cst = arith.constant dense<0.000000e+00> : vector<128x8xf32>
    %4 = tpu.matmul %2, %3, %cst {dimension_numbers = #tpu.dot_dimension_numbers<[1], [0], [0], [1], [0, 0, 1, 1], [], []>} : vector<128x32xbf16>, vector<32x8xbf16>, vector<128x8xf32> -> vector<128x8xf32>
    %5 = arith.truncf %4 : vector<128x8xf32> to vector<128x8xbf16>
    %6 = vector.shape_cast %5 : vector<128x8xbf16> to vector<1x8x16x8xbf16>
    %c0_5 = arith.constant 0 : index
    %c0_6 = arith.constant 0 : index
    %c0_7 = arith.constant 0 : index
    %c0_8 = arith.constant 0 : index
    %7 = vector.load %arg4[%c0_5, %c0_6, %c0_7, %c0_8] : memref<1x8x16x8xbf16, #tpu.memory_space<vmem>>, vector<1x8x16x8xbf16>
    tpu.vector_store %arg4[%c0_5, %c0_6, %c0_7, %c0_8], %6 {strides = array<i32>} : memref<1x8x16x8xbf16, #tpu.memory_space<vmem>>, vector<1x8x16x8xbf16>,
    %8 = arith.extf %5 : vector<128x8xbf16> to vector<128x8xf32>
    %cst_9 = arith.constant dense<0.000000e+00> : vector<8xf32>
    %9 = vector.multi_reduction <add>, %8, %cst_9 [0] : vector<128x8xf32> to vector<8xf32>
    %10 = vector.shape_cast %9 : vector<8xf32> to vector<1x8xf32>
    %11 = arith.mulf %8, %8 : vector<128x8xf32>
    %cst_10 = arith.constant dense<0.000000e+00> : vector<8xf32>
    %12 = vector.multi_reduction <add>, %11, %cst_10 [0] : vector<128x8xf32> to vector<8xf32>
    %13 = vector.shape_cast %12 : vector<8xf32> to vector<1x8xf32>
    %14 = tpu.concatenate %10, %13 in 0 : vector<1x8xf32>, vector<1x8xf32> -> vector<2x8xf32>
    %15 = vector.shape_cast %14 : vector<2x8xf32> to vector<1x1x2x8xf32>
    %c0_11 = arith.constant 0 : index
    %c0_12 = arith.constant 0 : index
    %c0_13 = arith.constant 0 : index
    %c0_14 = arith.constant 0 : index
    %16 = vector.load %arg5[%c0_11, %c0_12, %c0_13, %c0_14] : memref<1x1x2x8xf32, #tpu.memory_space<vmem>>, vector<1x1x2x8xf32>
    tpu.vector_store %arg5[%c0_11, %c0_12, %c0_13, %c0_14], %15 {strides = array<i32>} : memref<1x1x2x8xf32, #tpu.memory_space<vmem>>, vector<1x1x2x8xf32>,
    return
  }
  func.func @transform_0(%arg0: i32, %arg1: i32) -> (i32, i32, i32, i32) {
    %c0_i32 = arith.constant 0 : i32
    %c0_i32_0 = arith.constant 0 : i32
    %c0_i32_1 = arith.constant 0 : i32
    return %arg0, %arg1, %c0_i32, %c0_i32_0 : i32, i32, i32, i32
  }
  func.func @transform_1(%arg0: i32, %arg1: i32) -> (i32, i32) {
    %c0_i32 = arith.constant 0 : i32
    %c0_i32_0 = arith.constant 0 : i32
    %c0_i32_1 = arith.constant 0 : i32
    return %c0_i32, %c0_i32_0 : i32, i32
  }
  func.func @transform_2(%arg0: i32, %arg1: i32) -> (i32, i32, i32, i32) {
    %c0_i32 = arith.constant 0 : i32
    %c0_i32_0 = arith.constant 0 : i32
    %c0_i32_1 = arith.constant 0 : i32
    return %arg0, %arg1, %c0_i32, %c0_i32_0 : i32, i32, i32, i32
  }
  func.func @transform_3(%arg0: i32, %arg1: i32) -> (i32, i32, i32, i32) {
    %c0_i32 = arith.constant 0 : i32
    %c0_i32_0 = arith.constant 0 : i32
    %c0_i32_1 = arith.constant 0 : i32
    return %arg0, %arg1, %c0_i32, %c0_i32_0 : i32, i32, i32, i32
  }
}

</mosaic_0001>

<llo_original>
// kernel: tpu_custom_call.1
$region0: #{tpu_custom_call.1}
  #allocation0 [shape = 'u32[]', space=smem, size = 0x4, offset = 0x4, fixed_abs, tag = 'smem constant byte address 0x4 - core index']
  #allocation1 [shape = 'u32[144,128]{1,0:T(1,128)}', space=vmem, size = 0x12000, scoped, tag = 'internal scratch']
  %s0 = inlined_call_operand.hbm [shape: bf16[2,16,16,32], index: 0, kind: input, shape index: {}]
  %s1 = inlined_call_operand.vmem [shape: bf16[32,8], index: 1, kind: input, shape index: {}]
  %s2 = inlined_call_operand.vmem [shape: bf16[2,16,16,8], index: 2, kind: output, shape index: {0}]
  %s3 = inlined_call_operand.hbm [shape: f32[2,2,2,8], index: 3, kind: output, shape index: {1}]
  %4 = xla_tuple %s2, %s3
  %s5 = sld [smem:[#allocation0]]
  $region53: #{tpu_custom_call.1} parent=0
    _
  %s7 = ssub.s32 1, %s5
  %s8 = scalar_select 0, %s7, %s5
  $region1: #{tpu_custom_call.1} parent=0
    #allocation2 [shape = 'u8[65536]{0}', space=vmem, size = 0x10000, scoped, tag = 'input window, operand 0']
    #allocation3 [shape = 's32[2]{0}', space=sflag, size = 0x8, scoped, tag = 'scoped memory for tpu_custom_call.1']
    #allocation4 [shape = 's32[2]{0}', space=sflag, size = 0x8, scoped, tag = 'scoped memory for tpu_custom_call.1']
    #allocation5 [shape = 'u8[2048]{0}', space=vmem, size = 0x800, scoped, tag = 'output window, operand 1']
    %9 = vsyncpa [#allocation3], 0
    %s10 = scalar_lea.sflag [#allocation3], 1
    %11 = vsyncpa %s10, 0
    %12 = vsyncpa [#allocation4], 0
    %s13 = scalar_lea.sflag [#allocation4], 1
    %14 = vsyncpa %s13, 0
    loop: start=0, step=1, limit=6
    $region2: #{tpu_custom_call.1} parent=1 // loop_pre_header
      _
    $region3: #{tpu_custom_call.1} parent=1 // loop_header
      %s16 = sphi 0, %s20
      %p17 = scmp.ge.s32.totalorder %s16, 6
      %s23 = sphi 0, %s35
      %s24 = sphi 0, %s31
      %s25 = sphi 0, %s23
      %s26 = sphi 0, %s24
      %s27 = sphi 0, %s25
      %s28 = sphi 0, %s26
      %s40 = sphi 0, %s42
      %s43 = sphi 0, %s40
      %s44 = sphi 0, %s43
      %s60 = sphi 0, %s44
      %s64 = sphi 0, %s64
      %s66 = sphi 0, %s64
      %s67 = sphi 0, %s66
      %s81 = sphi 0, %s67
      %s89 = sphi 0, %s91
      %s92 = sphi 0, %s89
      %s93 = sphi 0, %s92
      %s109 = sphi 0, %s93
      %s117 = sphi 0, %s119
      %s120 = sphi 0, %s117
      %s121 = sphi 0, %s120
      %s137 = sphi 0, %s121
    $region4: #{tpu_custom_call.1} parent=1 // loop_header_branch
      %19 = sbr.rel (%p17) target = $region8
    $region5: #{tpu_custom_call.1} parent=1 // loop_body
      %s21 = ssub.s32 %s16, 1
      %s22 = ssub.s32 %s16, 2
      %s29 = sadd.s32 1, %s24
      %p30 = scmp.ge.s32.totalorder %s29, 2
      %s31 = scalar_select %p30, 0, %s29
      %s32 = sadd.s32 1, %s23
      %s33 = scalar_select %p30, %s32, %s23
      %p34 = scmp.ge.s32.totalorder %s33, 2
      %s35 = scalar_select %p34, 0, %s33
      %s36 = ssub.s32 %s23, %s35
      %s37 = ssub.s32 %s24, %s31
      %s38 = sor.u32 %s36, %s37
      %p39 = scmp.eq.s32.totalorder %s38, 0
      %s41 = sadd.s32 %s40, 1
      %s42 = scalar_select %p39, %s40, %s41
      %p45 = pneg %p39
      %p46 = scmp.eq.s32.totalorder %s16, 3
      %p47 = por %p45, %p46
      %p48 = scmp.ne.s32.totalorder %s40, %s43
      %p49 = scmp.eq.s32.totalorder %s16, 0
      %p50 = por %p48, %p49
      %p51 = scmp.ne.s32.totalorder %s40, %s43
      %p52 = scmp.eq.s32.totalorder %s21, 3
      %p53 = por %p51, %p52
      %p54 = scmp.ne.s32.totalorder %s43, %s44
      %p55 = scmp.eq.s32.totalorder %s21, 0
      %p56 = por %p54, %p55
      %p57 = scmp.ne.s32.totalorder %s43, %s44
      %p58 = scmp.eq.s32.totalorder %s22, 3
      %p59 = por %p57, %p58
      %p61 = scmp.ne.s32.totalorder %s44, %s60
      %p62 = scmp.eq.s32.totalorder %s22, 0
      %p63 = por %p61, %p62
      %s65 = sadd.s32 %s64, 1
      %p68 = scmp.eq.s32.totalorder %s16, 3
      %p69 = scmp.ne.s32.totalorder %s64, %s66
      %p70 = scmp.eq.s32.totalorder %s16, 0
      %p71 = por %p69, %p70
      %p72 = scmp.ne.s32.totalorder %s64, %s66
      %p73 = scmp.eq.s32.totalorder %s21, 3
      %p74 = por %p72, %p73
      %p75 = scmp.ne.s32.totalorder %s66, %s67
      %p76 = scmp.eq.s32.totalorder %s21, 0
      %p77 = por %p75, %p76
      %p78 = scmp.ne.s32.totalorder %s66, %s67
      %p79 = scmp.eq.s32.totalorder %s22, 3
      %p80 = por %p78, %p79
      %p82 = scmp.ne.s32.totalorder %s67, %s81
      %p83 = scmp.eq.s32.totalorder %s22, 0
      %p84 = por %p82, %p83
      %s85 = ssub.s32 %s23, %s35
      %s86 = ssub.s32 %s24, %s31
      %s87 = sor.u32 %s85, %s86
      %p88 = scmp.eq.s32.totalorder %s87, 0
      %s90 = sadd.s32 %s89, 1
      %s91 = scalar_select %p88, %s89, %s90
      %p94 = pneg %p88
      %p95 = scmp.eq.s32.totalorder %s16, 3
      %p96 = por %p94, %p95
      %p97 = scmp.ne.s32.totalorder %s89, %s92
      %p98 = scmp.eq.s32.totalorder %s16, 0
      %p99 = por %p97, %p98
      %p100 = scmp.ne.s32.totalorder %s89, %s92
      %p101 = scmp.eq.s32.totalorder %s21, 3
      %p102 = por %p100, %p101
      %p103 = scmp.ne.s32.totalorder %s92, %s93
      %p104 = scmp.eq.s32.totalorder %s21, 0
      %p105 = por %p103, %p104
      %p106 = scmp.ne.s32.totalorder %s92, %s93
      %p107 = scmp.eq.s32.totalorder %s22, 3
      %p108 = por %p106, %p107
      %p110 = scmp.ne.s32.totalorder %s93, %s109
      %p111 = scmp.eq.s32.totalorder %s22, 0
      %p112 = por %p110, %p111
      %s113 = ssub.s32 %s23, %s35
      %s114 = ssub.s32 %s24, %s31
      %s115 = sor.u32 %s113, %s114
      %p116 = scmp.eq.s32.totalorder %s115, 0
      %s118 = sadd.s32 %s117, 1
      %s119 = scalar_select %p116, %s117, %s118
      %p122 = pneg %p116
      %p123 = scmp.eq.s32.totalorder %s16, 3
      %p124 = por %p122, %p123
      %p125 = scmp.ne.s32.totalorder %s117, %s120
      %p126 = scmp.eq.s32.totalorder %s16, 0
      %p127 = por %p125, %p126
      %p128 = scmp.ne.s32.totalorder %s117, %s120
      %p129 = scmp.eq.s32.totalorder %s21, 3
      %p130 = por %p128, %p129
      %p131 = scmp.ne.s32.totalorder %s120, %s121
      %p132 = scmp.eq.s32.totalorder %s21, 0
      %p133 = por %p131, %p132
      %p134 = scmp.ne.s32.totalorder %s120, %s121
      %p135 = scmp.eq.s32.totalorder %s22, 3
      %p136 = por %p134, %p135
      %p138 = scmp.ne.s32.totalorder %s121, %s137
      %p139 = scmp.eq.s32.totalorder %s22, 0
      %p140 = por %p138, %p139
      %p141 = scmp.le.s32.totalorder 1, %s16
      %p142 = scmp.lt.s32.totalorder %s16, 5
      %p143 = pnand %p141, %p142
      %p144 = pneg %p143
      // Predicated region
      $region9: #{tpu_custom_call.1} parent=5 // pred_check
        _
      $region10: #{tpu_custom_call.1} parent=5 // pred_check_branch
        %146 = sbr.rel (%p143) target = $region12
      $region11: #{tpu_custom_call.1} parent=5 // pred_region
        %s147 = ssub.s32 %s16, 1
        // Predicated region
        $region13: #{tpu_custom_call.1} parent=11 // pred_check
          %p148 = pneg %p77
        $region14: #{tpu_custom_call.1} parent=11 // pred_check_branch
          %150 = sbr.rel (%p148) target = $region16
        $region15: #{tpu_custom_call.1} parent=11 // pred_region
          _
        $region16: #{tpu_custom_call.1} parent=11 // pred_fallthru
          _
      $region12: #{tpu_custom_call.1} parent=5 // pred_fallthru
        _
      %p151 = scmp.lt.s32.totalorder %s16, 4
      // Predicated region
      $region17: #{tpu_custom_call.1} parent=5 // pred_check
        %p152 = pneg %p151
      $region18: #{tpu_custom_call.1} parent=5 // pred_check_branch
        %154 = sbr.rel (%p152) target = $region20
      $region19: #{tpu_custom_call.1} parent=5 // pred_region
        // Predicated region
        $region21: #{tpu_custom_call.1} parent=19 // pred_check
          %p155 = pneg %p50
        $region22: #{tpu_custom_call.1} parent=19 // pred_check_branch
          %157 = sbr.rel (%p155) target = $region24
        $region23: #{tpu_custom_call.1} parent=19 // pred_region
          %s158 = sand.u32 %s40, 1
          %s159 = scalar_lea.sflag [#allocation3], %s158
          %s160 = sand.u32 %s40, 1
          %s161 = smul.addr %s160, 64
          %s162 = scalar_lea.vmem [#allocation2], %s161
          %s163 = smul.u32 8, %s24
          %s165 = ssub.s32 1024, 1024
          %166 = vsyncadd %s159, %s165
          %s167 = smul.addr %s163, 2
          %s168 = smul.addr %s23, 32
          %s169 = sadd.s32 %s167, %s168
          %s170 = smul.addr %s169, 64
          %s171 = scalar_lea.hbm %s0, %s170
          %s172 = sshll.u32 %s162, 4
          %s173 = int_to_ptr.vmem [resolvable:$true] %s172
          %178 = dma.hbm_to_vmem [thread:$0]  %s171, 1024, %s173, %s159, 64, 64, 4
        $region24: #{tpu_custom_call.1} parent=19 // pred_fallthru
          _
      $region20: #{tpu_custom_call.1} parent=5 // pred_fallthru
        _
      %p179 = scmp.le.s32.totalorder 1, %s16
      %p180 = scmp.lt.s32.totalorder %s16, 5
      %p181 = pnand %p179, %p180
      %p182 = pneg %p181
      // Predicated region
      $region25: #{tpu_custom_call.1} parent=5 // pred_check
        _
      $region26: #{tpu_custom_call.1} parent=5 // pred_check_branch
        %184 = sbr.rel (%p181) target = $region28
      $region27: #{tpu_custom_call.1} parent=5 // pred_region
        %s185 = ssub.s32 %s16, 1
        %s186 = sand.u32 %s43, 1
        %s187 = scalar_lea.sflag [#allocation3], %s186
        %s188 = sand.u32 %s43, 1
        %s189 = smul.addr %s188, 64
        %s190 = scalar_lea.vmem [#allocation2], %s189
        // Predicated region
        $region29: #{tpu_custom_call.1} parent=27 // pred_check
          %p191 = pneg %p56
        $region30: #{tpu_custom_call.1} parent=27 // pred_check_branch
          %193 = sbr.rel (%p191) target = $region32
        $region31: #{tpu_custom_call.1} parent=27 // pred_region
          %194 = dma.done %s187, 1024
        $region32: #{tpu_custom_call.1} parent=27 // pred_fallthru
          _
        %s195 = sand.u32 %s43, 1
        %s196 = scalar_lea.sflag [#allocation3], %s195
        %s197 = sand.u32 %s43, 1
        %s198 = smul.addr %s197, 64
        %s199 = scalar_lea.vmem [#allocation2], %s198
        %p200 = pneg %p56
        %p201 = pneg %p53
        %p202 = pneg %p77
        %p203 = pneg %p74
        %p204 = pneg %p105
        %p205 = pneg %p102
        %s206 = smul.u32 8, %s26
        %p207 = scmp.lt.s32.totalorder %s25, 1
        %s208 = scalar_select %p207, %s25, 1
        %p209 = scmp.lt.s32.totalorder %s206, 15
        %s210 = scalar_select %p209, %s206, 15
        %s211 = smul.addr %s210, 2
        %s212 = smul.addr %s208, 32
        %s213 = sadd.s32 %s211, %s212
        %s214 = smul.addr %s213, 4
        %s215 = scalar_lea.vmem %s2, %s214
        %p216 = pneg %p133
        %p217 = pneg %p130
        %s218 = sand.u32 %s120, 1
        %s219 = scalar_lea.sflag [#allocation4], %s218
        %s220 = sand.u32 %s120, 1
        %s221 = smul.addr %s220, 2
        %s222 = scalar_lea.vmem [#allocation5], %s221
        %s223 = smul.u32 8, %s26
        %s224 = smul.u32 8, %s26
        %p225 = scmp.lt.s32.totalorder %s25, 1
        %s226 = scalar_select %p225, %s25, 1
        %p227 = scmp.lt.s32.totalorder %s224, 15
        %s228 = scalar_select %p227, %s224, 15
        %s229 = smul.addr %s228, 2
        %s230 = smul.addr %s226, 32
        %s231 = sadd.s32 %s229, %s230
        %s232 = smul.addr %s231, 4
        %s233 = scalar_lea.vmem %s2, %s232
        %s234 = smul.u32 8, %s26
        %v236 = vld [vmem:[%s190] sm:$0xf]
        %v237 = vld [vmem:[%s190 + $0x4] sm:$0xf]
        %v238 = vld [vmem:[%s190 + $0x8] sm:$0xf]
        %v239 = vld [vmem:[%s190 + $0xc] sm:$0xf]
        %v240 = vld [vmem:[%s190 + $0x10] sm:$0xf]
        %v241 = vld [vmem:[%s190 + $0x14] sm:$0xf]
        %v242 = vld [vmem:[%s190 + $0x18] sm:$0xf]
        %v243 = vld [vmem:[%s190 + $0x1c] sm:$0xf]
        %v244 = vld [vmem:[%s190 + $0x20] sm:$0xf]
        %v245 = vld [vmem:[%s190 + $0x24] sm:$0xf]
        %v246 = vld [vmem:[%s190 + $0x28] sm:$0xf]
        %v247 = vld [vmem:[%s190 + $0x2c] sm:$0xf]
        %v248 = vld [vmem:[%s190 + $0x30] sm:$0xf]
        %v249 = vld [vmem:[%s190 + $0x34] sm:$0xf]
        %v250 = vld [vmem:[%s190 + $0x38] sm:$0xf]
        %v251 = vld [vmem:[%s190 + $0x3c] sm:$0xf]
        %v252 = vld [vmem:[%s1] sm:$0xf]
        %v253 = vld [vmem:[%s1 + $0x4] sm:$0xf]
        %v254 = vld [vmem:[%s1 + $0x8] sm:$0xf]
        %v255 = vld [vmem:[%s1 + $0xc] sm:$0xf]
        %v272 = vunpack.c.l.b16 %v236
        %v273 = vunpack.c.l.b16 %v237
        %v274 = vunpack.c.l.b16 %v238
        %v275 = vunpack.c.l.b16 %v239
        %v276 = vunpack.c.l.b16 %v240
        %v277 = vunpack.c.l.b16 %v241
        %v278 = vunpack.c.l.b16 %v242
        %v279 = vunpack.c.l.b16 %v243
        %v280 = vunpack.c.l.b16 %v244
        %v281 = vunpack.c.l.b16 %v245
        %v282 = vunpack.c.l.b16 %v246
        %v283 = vunpack.c.l.b16 %v247
        %v284 = vunpack.c.l.b16 %v248
        %v285 = vunpack.c.l.b16 %v249
        %v286 = vunpack.c.l.b16 %v250
        %v287 = vunpack.c.l.b16 %v251
        %v288 = vpack.c.b16 %v273, %v272
        %v289 = vpack.c.b16 %v275, %v274
        %v290 = vpack.c.b16 %v277, %v276
        %v291 = vpack.c.b16 %v279, %v278
        %v292 = vpack.c.b16 %v281, %v280
        %v293 = vpack.c.b16 %v283, %v282
        %v294 = vpack.c.b16 %v285, %v284
        %v295 = vpack.c.b16 %v287, %v286
        %v300 = vunpack.c.l.b16 %v252
        %v301 = vunpack.c.l.b16 %v253
        %v302 = vunpack.c.l.b16 %v254
        %v303 = vunpack.c.l.b16 %v255
        %v304 = vpack.c.b16 %v301, %v300
        %v305 = vpack.c.b16 %v303, %v302
        %vm308 = vcmask 261120
        %v310 = vsel %vm308, %v288, 0
        %v313 = vsel %vm308, %v289, 0
        %v316 = vsel %vm308, %v290, 0
        %v319 = vsel %vm308, %v291, 0
        %v322 = vsel %vm308, %v292, 0
        %v325 = vsel %vm308, %v293, 0
        %v328 = vsel %vm308, %v294, 0
        %v331 = vsel %vm308, %v295, 0
        %333 = vmatprep.subr.bf16.mxu0 0
        %334 = vmatpush1.bf16.msra.mxu0 %v304
        %335 = vmatprep.subr.bf16.mxu0 0
        %336 = vmatpush1.bf16.msra.mxu0 %v305
        %337 = vmatprep.subr.bf16.mxu0 0
        %338 = vmatpush1.bf16.msra.mxu0 0
        %339 = vmatprep.subr.bf16.mxu0 0
        %340 = vmatpush1.bf16.msra.mxu0 0
        %341 = vmatprep.subr.bf16.mxu0 0
        %342 = vmatpush1.bf16.msra.mxu0 0
        %343 = vmatprep.subr.bf16.mxu0 0
        %344 = vmatpush1.bf16.msra.mxu0 0
        %345 = vmatprep.subr.bf16.mxu0 0
        %346 = vmatpush1.bf16.msra.mxu0 0
        %347 = vmatprep.subr.bf16.mxu0 0
        %348 = vmatpush1.bf16.msra.mxu0 0
        %349 = vmatprep.subr.bf16.mxu0 0
        %350 = vmatpush1.bf16.msra.mxu0 0
        %351 = vmatprep.subr.bf16.mxu0 0
        %352 = vmatpush1.bf16.msra.mxu0 0
        %353 = vmatprep.subr.bf16.mxu0 0
        %354 = vmatpush1.bf16.msra.mxu0 0
        %355 = vmatprep.subr.bf16.mxu0 0
        %356 = vmatpush1.bf16.msra.mxu0 0
        %357 = vmatprep.subr.bf16.mxu0 0
        %358 = vmatpush1.bf16.msra.mxu0 0
        %359 = vmatprep.subr.bf16.mxu0 0
        %360 = vmatpush1.bf16.msra.mxu0 0
        %361 = vmatprep.subr.bf16.mxu0 0
        %362 = vmatpush1.bf16.msra.mxu0 0
        %363 = vmatprep.subr.bf16.mxu0 0
        %364 = vmatpush1.bf16.msra.mxu0 0
        %365 = vmatprep.mubr.bf16.mxu0 0
        %366 = vmatmul.mubr.bf16.gmra.mrb[0].mxu0 %v310
        %v367 = vpop.f32.mrb[0].mxu0
        %v368 = vadd.f32 0.0, %v367
        %v369 = vpop.f32.mrb[0].mxu0
        %v370 = vpop.f32.mrb[0].mxu0
        %v371 = vadd.f32 0.0, %v370
        %v372 = vpop.f32.mrb[0].mxu0
        %373 = vmatprep.mubr.bf16.mxu0 0
        %374 = vmatmul.mubr.bf16.gmra.mrb[0].mxu0 %v313
        %v375 = vpop.f32.mrb[0].mxu0
        %v376 = vadd.f32 0.0, %v375
        %v377 = vpop.f32.mrb[0].mxu0
        %v378 = vpop.f32.mrb[0].mxu0
        %v379 = vadd.f32 0.0, %v378
        %v380 = vpop.f32.mrb[0].mxu0
        %381 = vmatprep.mubr.bf16.mxu0 0
        %382 = vmatmul.mubr.bf16.gmra.mrb[0].mxu0 %v316
        %v383 = vpop.f32.mrb[0].mxu0
        %v384 = vadd.f32 0.0, %v383
        %v385 = vpop.f32.mrb[0].mxu0
        %v386 = vpop.f32.mrb[0].mxu0
        %v387 = vadd.f32 0.0, %v386
        %v388 = vpop.f32.mrb[0].mxu0
        %389 = vmatprep.mubr.bf16.mxu0 0
        %390 = vmatmul.mubr.bf16.gmra.mrb[0].mxu0 %v319
        %v391 = vpop.f32.mrb[0].mxu0
        %v392 = vadd.f32 0.0, %v391
        %v393 = vpop.f32.mrb[0].mxu0
        %v394 = vpop.f32.mrb[0].mxu0
        %v395 = vadd.f32 0.0, %v394
        %v396 = vpop.f32.mrb[0].mxu0
        %397 = vmatprep.mubr.bf16.mxu0 0
        %398 = vmatmul.mubr.bf16.gmra.mrb[0].mxu0 %v322
        %v399 = vpop.f32.mrb[0].mxu0
        %v400 = vadd.f32 0.0, %v399
        %v401 = vpop.f32.mrb[0].mxu0
        %v402 = vpop.f32.mrb[0].mxu0
        %v403 = vadd.f32 0.0, %v402
        %v404 = vpop.f32.mrb[0].mxu0
        %405 = vmatprep.mubr.bf16.mxu0 0
        %406 = vmatmul.mubr.bf16.gmra.mrb[0].mxu0 %v325
        %v407 = vpop.f32.mrb[0].mxu0
        %v408 = vadd.f32 0.0, %v407
        %v409 = vpop.f32.mrb[0].mxu0
        %v410 = vpop.f32.mrb[0].mxu0
        %v411 = vadd.f32 0.0, %v410
        %v412 = vpop.f32.mrb[0].mxu0
        %413 = vmatprep.mubr.bf16.mxu0 0
        %414 = vmatmul.mubr.bf16.gmra.mrb[0].mxu0 %v328
        %v415 = vpop.f32.mrb[0].mxu0
        %v416 = vadd.f32 0.0, %v415
        %v417 = vpop.f32.mrb[0].mxu0
        %v418 = vpop.f32.mrb[0].mxu0
        %v419 = vadd.f32 0.0, %v418
        %v420 = vpop.f32.mrb[0].mxu0
        %421 = vmatprep.mubr.bf16.mxu0 0
        %422 = vmatmul.mubr.bf16.gmra.mrb[0].mxu0 %v331
        %v423 = vpop.f32.mrb[0].mxu0
        %v424 = vadd.f32 0.0, %v423
        %v425 = vpop.f32.mrb[0].mxu0
        %v426 = vpop.f32.mrb[0].mxu0
        %v427 = vadd.f32 0.0, %v426
        %v428 = vpop.f32.mrb[0].mxu0
        %429 = vdwg.mxu0
        %v430 = vpack.c.bf16 %v371, %v368
        %v431 = vpack.c.bf16 %v379, %v376
        %v432 = vpack.c.bf16 %v387, %v384
        %v433 = vpack.c.bf16 %v395, %v392
        %v434 = vpack.c.bf16 %v403, %v400
        %v435 = vpack.c.bf16 %v411, %v408
        %v436 = vpack.c.bf16 %v419, %v416
        %v437 = vpack.c.bf16 %v427, %v424
        %v446 = vunpack.c.l.b16 %v430
        %v447 = vunpack.c.h.b16 %v430
        %v448 = vunpack.c.l.b16 %v431
        %v449 = vunpack.c.h.b16 %v431
        %v450 = vunpack.c.l.b16 %v432
        %v451 = vunpack.c.h.b16 %v432
        %v452 = vunpack.c.l.b16 %v433
        %v453 = vunpack.c.h.b16 %v433
        %v454 = vunpack.c.l.b16 %v434
        %v455 = vunpack.c.h.b16 %v434
        %v456 = vunpack.c.l.b16 %v435
        %v457 = vunpack.c.h.b16 %v435
        %v458 = vunpack.c.l.b16 %v436
        %v459 = vunpack.c.h.b16 %v436
        %v460 = vunpack.c.l.b16 %v437
        %v461 = vunpack.c.h.b16 %v437
        %v462 = vpack.c.b16 %v446, %v446
        %v463 = vpack.c.b16 %v447, %v447
        %v464 = vpack.c.b16 %v448, %v448
        %v465 = vpack.c.b16 %v449, %v449
        %v466 = vpack.c.b16 %v450, %v450
        %v467 = vpack.c.b16 %v451, %v451
        %v468 = vpack.c.b16 %v452, %v452
        %v469 = vpack.c.b16 %v453, %v453
        %v470 = vpack.c.b16 %v454, %v454
        %v471 = vpack.c.b16 %v455, %v455
        %v472 = vpack.c.b16 %v456, %v456
        %v473 = vpack.c.b16 %v457, %v457
        %v474 = vpack.c.b16 %v458, %v458
        %v475 = vpack.c.b16 %v459, %v459
        %v476 = vpack.c.b16 %v460, %v460
        %v477 = vpack.c.b16 %v461, %v461
        %vm494 = vcmask 60416
        %495 = vst.msk [vmem:[%s233] sm:$0xf] %vm494, %v462
        %496 = vst.msk [vmem:[%s233 + $0x4] sm:$0xf] %vm494, %v463
        %497 = vst.msk [vmem:[%s233 + $0x8] sm:$0xf] %vm494, %v464
        %498 = vst.msk [vmem:[%s233 + $0xc] sm:$0xf] %vm494, %v465
        %499 = vst.msk [vmem:[%s233 + $0x10] sm:$0xf] %vm494, %v466
        %500 = vst.msk [vmem:[%s233 + $0x14] sm:$0xf] %vm494, %v467
        %501 = vst.msk [vmem:[%s233 + $0x18] sm:$0xf] %vm494, %v468
        %502 = vst.msk [vmem:[%s233 + $0x1c] sm:$0xf] %vm494, %v469
        %503 = vst.msk [vmem:[%s233 + $0x20] sm:$0xf] %vm494, %v470
        %504 = vst.msk [vmem:[%s233 + $0x24] sm:$0xf] %vm494, %v471
        %505 = vst.msk [vmem:[%s233 + $0x28] sm:$0xf] %vm494, %v472
        %506 = vst.msk [vmem:[%s233 + $0x2c] sm:$0xf] %vm494, %v473
        %507 = vst.msk [vmem:[%s233 + $0x30] sm:$0xf] %vm494, %v474
        %508 = vst.msk [vmem:[%s233 + $0x34] sm:$0xf] %vm494, %v475
        %509 = vst.msk [vmem:[%s233 + $0x38] sm:$0xf] %vm494, %v476
        %510 = vst.msk [vmem:[%s233 + $0x3c] sm:$0xf] %vm494, %v477
        %v511 = vunpack.c.l.bf16 %v430
        %v512 = vunpack.c.h.bf16 %v430
        %v513 = vunpack.c.l.bf16 %v431
        %v514 = vunpack.c.h.bf16 %v431
        %v515 = vunpack.c.l.bf16 %v432
        %v516 = vunpack.c.h.bf16 %v432
        %v517 = vunpack.c.l.bf16 %v433
        %v518 = vunpack.c.h.bf16 %v433
        %v519 = vunpack.c.l.bf16 %v434
        %v520 = vunpack.c.h.bf16 %v434
        %v521 = vunpack.c.l.bf16 %v435
        %v522 = vunpack.c.h.bf16 %v435
        %v523 = vunpack.c.l.bf16 %v436
        %v524 = vunpack.c.h.bf16 %v436
        %v525 = vunpack.c.l.bf16 %v437
        %v526 = vunpack.c.h.bf16 %v437
        %vm527 = vcmask 64512
        %v528 = vsel %vm527, %v511, 0.0
        %v529 = vsel %vm527, %v512, 0.0
        %v530 = vadd.f32 %v528, %v529
        %v531 = vsel %vm527, %v513, 0.0
        %v532 = vadd.f32 %v530, %v531
        %v533 = vsel %vm527, %v514, 0.0
        %v534 = vadd.f32 %v532, %v533
        %v535 = vsel %vm527, %v515, 0.0
        %v536 = vadd.f32 %v534, %v535
        %v537 = vsel %vm527, %v516, 0.0
        %v538 = vadd.f32 %v536, %v537
        %v539 = vsel %vm527, %v517, 0.0
        %v540 = vadd.f32 %v538, %v539
        %v541 = vsel %vm527, %v518, 0.0
        %v542 = vadd.f32 %v540, %v541
        %v543 = vsel %vm527, %v519, 0.0
        %v544 = vadd.f32 %v542, %v543
        %v545 = vsel %vm527, %v520, 0.0
        %v546 = vadd.f32 %v544, %v545
        %v547 = vsel %vm527, %v521, 0.0
        %v548 = vadd.f32 %v546, %v547
        %v549 = vsel %vm527, %v522, 0.0
        %v550 = vadd.f32 %v548, %v549
        %v551 = vsel %vm527, %v523, 0.0
        %v552 = vadd.f32 %v550, %v551
        %v553 = vsel %vm527, %v524, 0.0
        %v554 = vadd.f32 %v552, %v553
        %v555 = vsel %vm527, %v525, 0.0
        %v556 = vadd.f32 %v554, %v555
        %v557 = vsel %vm527, %v526, 0.0
        %v558 = vadd.f32 %v556, %v557
        %v559 = vrot.slane %v558, 4
        %v560 = vadd.f32 %v558, %v559
        %v561 = vrot.slane %v560, 2
        %v562 = vadd.f32 %v560, %v561
        %v563 = vrot.slane %v562, 1
        %v564 = vadd.f32 %v562, %v563
        %v565 = vmul.f32 %v511, %v511
        %v566 = vmul.f32 %v512, %v512
        %v567 = vmul.f32 %v513, %v513
        %v568 = vmul.f32 %v514, %v514
        %v569 = vmul.f32 %v515, %v515
        %v570 = vmul.f32 %v516, %v516
        %v571 = vmul.f32 %v517, %v517
        %v572 = vmul.f32 %v518, %v518
        %v573 = vmul.f32 %v519, %v519
        %v574 = vmul.f32 %v520, %v520
        %v575 = vmul.f32 %v521, %v521
        %v576 = vmul.f32 %v522, %v522
        %v577 = vmul.f32 %v523, %v523
        %v578 = vmul.f32 %v524, %v524
        %v579 = vmul.f32 %v525, %v525
        %v580 = vmul.f32 %v526, %v526
        %v581 = vsel %vm527, %v565, 0.0
        %v582 = vsel %vm527, %v566, 0.0
        %v583 = vadd.f32 %v581, %v582
        %v584 = vsel %vm527, %v567, 0.0
        %v585 = vadd.f32 %v583, %v584
        %v586 = vsel %vm527, %v568, 0.0
        %v587 = vadd.f32 %v585, %v586
        %v588 = vsel %vm527, %v569, 0.0
        %v589 = vadd.f32 %v587, %v588
        %v590 = vsel %vm527, %v570, 0.0
        %v591 = vadd.f32 %v589, %v590
        %v592 = vsel %vm527, %v571, 0.0
        %v593 = vadd.f32 %v591, %v592
        %v594 = vsel %vm527, %v572, 0.0
        %v595 = vadd.f32 %v593, %v594
        %v596 = vsel %vm527, %v573, 0.0
        %v597 = vadd.f32 %v595, %v596
        %v598 = vsel %vm527, %v574, 0.0
        %v599 = vadd.f32 %v597, %v598
        %v600 = vsel %vm527, %v575, 0.0
        %v601 = vadd.f32 %v599, %v600
        %v602 = vsel %vm527, %v576, 0.0
        %v603 = vadd.f32 %v601, %v602
        %v604 = vsel %vm527, %v577, 0.0
        %v605 = vadd.f32 %v603, %v604
        %v606 = vsel %vm527, %v578, 0.0
        %v607 = vadd.f32 %v605, %v606
        %v608 = vsel %vm527, %v579, 0.0
        %v609 = vadd.f32 %v607, %v608
        %v610 = vsel %vm527, %v580, 0.0
        %v611 = vadd.f32 %v609, %v610
        %v612 = vrot.slane %v611, 4
        %v613 = vadd.f32 %v611, %v612
        %v614 = vrot.slane %v613, 2
        %v615 = vadd.f32 %v613, %v614
        %v616 = vrot.slane %v615, 1
        %v617 = vadd.f32 %v615, %v616
        %vm618 = vcmask 1040384
        %v619 = vsel %vm618, %v564, %v617
        %vm620 = vcmask 58368
        %621 = vst.msk [vmem:[%s222] sm:$0x3] %vm620, %v619
        %s622 = smul.u32 8, %s26
        %p623 = scmp.lt.s32.totalorder %s25, 1
        %s624 = scalar_select %p623, %s25, 1
        %p625 = scmp.lt.s32.totalorder %s622, 15
        %s626 = scalar_select %p625, %s622, 15
        %s627 = smul.addr %s626, 2
        %s628 = smul.addr %s624, 32
        %s629 = sadd.s32 %s627, %s628
        %s630 = smul.addr %s629, 4
        %s631 = scalar_lea.vmem %s2, %s630
        %s632 = sand.u32 %s120, 1
        %s633 = scalar_lea.sflag [#allocation4], %s632
        %s634 = sand.u32 %s120, 1
        %s635 = smul.addr %s634, 2
        %s636 = scalar_lea.vmem [#allocation5], %s635
        // Predicated region
        $region33: #{tpu_custom_call.1} parent=27 // pred_check
          %p637 = pneg %p102
        $region34: #{tpu_custom_call.1} parent=27 // pred_check_branch
          %639 = sbr.rel (%p637) target = $region36
        $region35: #{tpu_custom_call.1} parent=27 // pred_region
          %s640 = smul.u32 8, %s26
        $region36: #{tpu_custom_call.1} parent=27 // pred_fallthru
          _
        // Predicated region
        $region37: #{tpu_custom_call.1} parent=27 // pred_check
          %p641 = pneg %p130
        $region38: #{tpu_custom_call.1} parent=27 // pred_check_branch
          %643 = sbr.rel (%p641) target = $region40
        $region39: #{tpu_custom_call.1} parent=27 // pred_region
          %s645 = ssub.s32 32, 32
          %646 = vsyncadd %s633, %s645
          %s647 = smul.addr %s25, 2
          %s648 = sadd.s32 %s26, %s647
          %s649 = smul.addr %s648, 32
          %s650 = scalar_lea.hbm %s3, %s649
          %s652 = sshll.u32 %s636, 4
          %s653 = int_to_ptr.vmem [resolvable:$true] %s652
          %655 = dma.vmem_to_hbm [thread:$0]  %s653, 32, %s650, %s633
        $region40: #{tpu_custom_call.1} parent=27 // pred_fallthru
          _
      $region28: #{tpu_custom_call.1} parent=5 // pred_fallthru
        _
      %p656 = scmp.le.s32.totalorder 2, %s16
      // Predicated region
      $region41: #{tpu_custom_call.1} parent=5 // pred_check
        %p657 = pneg %p656
      $region42: #{tpu_custom_call.1} parent=5 // pred_check_branch
        %659 = sbr.rel (%p657) target = $region44
      $region43: #{tpu_custom_call.1} parent=5 // pred_region
        %s660 = ssub.s32 %s16, 2
        // Predicated region
        $region45: #{tpu_custom_call.1} parent=43 // pred_check
          %p661 = pneg %p108
        $region46: #{tpu_custom_call.1} parent=43 // pred_check_branch
          %663 = sbr.rel (%p661) target = $region48
        $region47: #{tpu_custom_call.1} parent=43 // pred_region
          %s664 = smul.u32 8, %s28
          %p665 = scmp.lt.s32.totalorder %s27, 1
          %s666 = scalar_select %p665, %s27, 1
          %p667 = scmp.lt.s32.totalorder %s664, 15
          %s668 = scalar_select %p667, %s664, 15
          %s669 = smul.addr %s668, 2
          %s670 = smul.addr %s666, 32
          %s671 = sadd.s32 %s669, %s670
          %s672 = smul.addr %s671, 4
          %s673 = scalar_lea.vmem %s2, %s672
        $region48: #{tpu_custom_call.1} parent=43 // pred_fallthru
          _
        // Predicated region
        $region49: #{tpu_custom_call.1} parent=43 // pred_check
          %p674 = pneg %p136
        $region50: #{tpu_custom_call.1} parent=43 // pred_check_branch
          %676 = sbr.rel (%p674) target = $region52
        $region51: #{tpu_custom_call.1} parent=43 // pred_region
          %s677 = sand.u32 %s121, 1
          %s678 = scalar_lea.sflag [#allocation4], %s677
          %s679 = sand.u32 %s121, 1
          %s680 = smul.addr %s679, 2
          %s681 = scalar_lea.vmem [#allocation5], %s680
          %682 = dma.done %s678, 32
        $region52: #{tpu_custom_call.1} parent=43 // pred_fallthru
          _
      $region44: #{tpu_custom_call.1} parent=5 // pred_fallthru
        _
    $region6: #{tpu_custom_call.1} parent=1 // loop_footer
      %s20 = sadd.s32 1, %s16
    $region7: #{tpu_custom_call.1} parent=1 // loop_footer_branch
      %15 = sbr.rel target = $region3
    $region8: #{tpu_custom_call.1} parent=1 // loop_exit
      _
    %683 = vsyncpa [#allocation3], 1
    %s684 = scalar_lea.sflag [#allocation3], 1
    %685 = vsyncpa %s684, 1
    %686 = vsyncpa [#allocation4], 1
    %s687 = scalar_lea.sflag [#allocation4], 1
    %688 = vsyncpa %s687, 1

</llo_original>
